<compile_context>
chip_gen: v7x
topology: tpu7x:2x2x1
jax: 0.10.0
libtpu: 0.0.40
codegen_flags: <defaults>
</compile_context>

<pallas_src>
import math
import functools

import jax
import jax.numpy as jnp
from jax.experimental import pallas as pl
from jax.experimental.pallas import tpu as pltpu


def _round_up(x, m):
    return ((x + m - 1) // m) * m


def _pick_row_tile(R):
    """Row-tile selection (R = B*M rows through the MLP).

    - R <= 128: one block == the whole padded array. Pad only to the bf16
      sublane multiple (16), not 128: at the test size R=16 this cuts the
      kernel's DMA'd rows and MXU pushes 8x vs. the old tm=128 padding.
    - 128 < R <= 2048: tm=128 -> >=2 "parallel" grid steps so both v7x
      TensorCores get work; v5e's 128-wide MXU is already full at 128 rows.
    - R > 2048: tm=512 streams more rows per weight push (amortizes MXU
      load/drain and the ~0.35us/step overhead; helps the 256-wide MXU on
      v6e/v7x).
    """
    if R <= 128:
        return _round_up(max(R, 16), 16)
    if R <= 2048:
        return 128
    return 512


# ----------------------------------------------------------------------------
# Pallas kernel: the `self.net` hot path (3 matmuls + biases + ReLUs on MXU/VPU)
# ----------------------------------------------------------------------------
def _crop_mlp_kernel(x1_ref, x2_ref, w1a_ref, w1b_ref, b1_ref,
                     w2_ref, b2_ref, w3_ref, b3_ref, o_ref):
    # Conv2d(2C,128,5) on a 5x5 input == dense layer. The torch input is
    # cat([x1, x2], dim=1); feeding the two halves separately with a split
    # weight avoids the (R, 2C*25) HBM concat:  h = x1@W1a + x2@W1b + b1.
    # bf16 operands -> MXU native; preferred_element_type=f32 keeps f32
    # accumulation (for bit-parity with the f32 PyTorch module use f32
    # operands + precision=HIGHEST instead; bf16 chosen per perf review).
    h = jnp.dot(x1_ref[...], w1a_ref[...], preferred_element_type=jnp.float32)
    h = h + jnp.dot(x2_ref[...], w1b_ref[...], preferred_element_type=jnp.float32)
    h = jnp.maximum(h + b1_ref[...], 0.0)                       # ReLU (VPU, f32)
    h = jnp.dot(h.astype(jnp.bfloat16), w2_ref[...],
                preferred_element_type=jnp.float32) + b2_ref[...]
    h = jnp.maximum(h, 0.0)                                     # ReLU after Linear(128,128)
    # Linear(128,1) written lane-dense: w3 (1,128) @ h^T (128,tm) -> (1,tm).
    # The (tm,128)->(128,tm) transpose is XLU work (free slot vs MXU/VPU);
    # every output lane is live -> unmasked stores, no 128x dead writeback.
    s = jnp.dot(w3_ref[...], h.T.astype(jnp.bfloat16),
                preferred_element_type=jnp.float32)
    o_ref[...] = (s + b3_ref[...]).reshape(o_ref.shape)


def crop_mlp_pallas(x1, x2, net, *, tm):
    Rp, K1p = x1.shape
    assert Rp % tm == 0, "rows must be padded to a multiple of the row tile"
    assert x2.shape == (Rp, K1p)
    H1 = net["w1a"].shape[1]      # 128
    H2 = net["w2"].shape[1]       # 128
    G = Rp // tm

    # VMEM budget per grid step:
    #   x1+x2 tiles: 2 * tm * K1p * 2 B  (bf16), double-buffered -> ~2 KiB/row
    #   weights/biases: ~0.17 MiB bf16, double-buffered -> ~0.35 MiB
    #     (grid-invariant; pl.Buffered(1) would reclaim half of that ~0.17 MiB
    #      -- negligible here, so left at default buffering)
    #   output row: tm * 4 B, double-buffered
    # tm ceiling before touching vmem_limit_bytes: ~8k rows under v5e's 16 MiB
    # scoped default, ~16k rows under v6e/v7x's 32 MiB default (v7x physical
    # VMEM is 64 MiB, not 128 -- don't size past it).
    return pl.pallas_call(
        _crop_mlp_kernel,
        out_shape=jax.ShapeDtypeStruct((G, 1, tm), jnp.float32),
        grid_spec=pltpu.PrefetchScalarGridSpec(
            num_scalar_prefetch=0,
            grid=(G,),
            in_specs=[
                pl.BlockSpec((tm, K1p), lambda i: (i, 0)),    # x1 (RoI) tile
                pl.BlockSpec((tm, K1p), lambda i: (i, 0)),    # x2 (RoD) tile
                pl.BlockSpec((K1p, H1), lambda i: (0, 0)),    # w1 RoI half
                pl.BlockSpec((K1p, H1), lambda i: (0, 0)),    # w1 RoD half
                pl.BlockSpec((1, H1), lambda i: (0, 0)),      # b1
                pl.BlockSpec((H1, H2), lambda i: (0, 0)),     # w2
                pl.BlockSpec((1, H2), lambda i: (0, 0)),      # b2
                pl.BlockSpec((1, H2), lambda i: (0, 0)),      # w3 (row)
                pl.BlockSpec((1, 1), lambda i: (0, 0)),       # b3 (scalar)
            ],
            out_specs=pl.BlockSpec((1, 1, tm), lambda i: (i, 0, 0)),
        ),
        compiler_params=pltpu.CompilerParams(dimension_semantics=("parallel",)),
    )(x1, x2, net["w1a"], net["w1b"], net["b1"],
      net["w2"], net["b2"], net["w3"], net["b3"]).reshape(G * tm)


# ----------------------------------------------------------------------------
# JAX glue: torchvision.ops.roi_align (aligned=False, sampling_ratio=-1),
# reformulated as two separable interpolation matmuls per RoI (gather-free,
# MXU-friendly). Einsums run with bf16 operands / f32 accumulation.
# Like torchvision, a single spatial_scale is applied to both axes (the module
# passes f.shape[-1]/img_size and uses square images / stride-16 features).
# TODO(synk): sampling stage not yet fused into the Pallas kernel (see header).
# ----------------------------------------------------------------------------
def roi_align_tv(f, boxes, B, M, pooled, spatial_scale):
    _, C, H, W = f.shape
    R = boxes.shape[0]
    sx1 = boxes[:, 0] * spatial_scale
    sy1 = boxes[:, 1] * spatial_scale
    sx2 = boxes[:, 2] * spatial_scale
    sy2 = boxes[:, 3] * spatial_scale
    roi_w = jnp.maximum(sx2 - sx1, 1.0)
    roi_h = jnp.maximum(sy2 - sy1, 1.0)
    bin_w = roi_w / pooled
    bin_h = roi_h / pooled
    n_w = jnp.ceil(roi_w / pooled).astype(jnp.int32)     # adaptive sampling ratio
    n_h = jnp.ceil(roi_h / pooled).astype(jnp.int32)
    # Static sample bound: valid because boxes are clipped to the image in
    # crop_score_forward (unclipped boxes would silently drop samples).
    max_s = max(1, int(math.ceil(max(H, W) / pooled)))

    ph = jnp.arange(pooled, dtype=jnp.float32)
    s = jnp.arange(max_s, dtype=jnp.float32)

    def axis_weights(start, bins, n, size, valid):
        # Sample coordinates along one axis: (R, pooled, max_s). f32 math.
        c = (start[:, None, None] + ph[None, :, None] * bins[:, None, None]
             + (s[None, None, :] + 0.5) * bins[:, None, None]
             / n[:, None, None].astype(jnp.float32))
        oob = (c < -1.0) | (c > size)                    # whole sample dropped when OOB
        cc = jnp.maximum(c, 0.0)
        lo = jnp.floor(cc).astype(jnp.int32)
        at_edge = lo >= size - 1
        hi = jnp.where(at_edge, size - 1, lo + 1)
        lo = jnp.where(at_edge, size - 1, lo)
        ce = jnp.where(at_edge, jnp.float32(size - 1), cc)
        frac = ce - lo.astype(jnp.float32)
        use = (valid & ~oob).astype(jnp.float32)         # (R, pooled, max_s)
        grid_idx = jnp.arange(size)
        oh_lo = (lo[..., None] == grid_idx).astype(jnp.float32)
        oh_hi = (hi[..., None] == grid_idx).astype(jnp.float32)
        wmat = (((1.0 - frac) * use)[..., None] * oh_lo
                + (frac * use)[..., None] * oh_hi).sum(axis=2)   # (R, pooled, size)
        return wmat / n[:, None, None].astype(jnp.float32)       # 1/(n_h*n_w) split per axis

    valid_h = jnp.arange(max_s)[None, None, :] < n_h[:, None, None]
    valid_w = jnp.arange(max_s)[None, None, :] < n_w[:, None, None]
    Wy = axis_weights(sy1, bin_h, n_h, H, valid_h)       # (R, 5, H)
    Wx = axis_weights(sx1, bin_w, n_w, W, valid_w)       # (R, 5, W)

    # pooled[r,c,ph,pw] = sum_{y,x} Wy[r,ph,y] * f[b_r,c,y,x] * Wx[r,pw,x]
    Wy_b = Wy.reshape(B, M, pooled, H).astype(jnp.bfloat16)
    Wx_b = Wx.reshape(B, M, pooled, W).astype(jnp.bfloat16)
    f_b = f.astype(jnp.bfloat16)
    t = jnp.einsum("bmpy,bcyx->bmpcx", Wy_b, f_b,
                   preferred_element_type=jnp.float32)
    out = jnp.einsum("bmpcx,bmqx->bmcpq", t.astype(jnp.bfloat16), Wx_b,
                     preferred_element_type=jnp.float32)
    return out.reshape(R, C, pooled, pooled)             # (B*M, C, 5, 5) f32


# ----------------------------------------------------------------------------
# JAX glue: RoDAlignAvg(5,5,1/16) following the GAIC rod_align CUDA semantics:
# (pooled+1)^2 bilinear grid over the *whole* feature map (fixed, data-
# independent interpolation matrices -> matmuls), samples inside the RoI
# zeroed, then 2x2 stride-1 average pool -> 5x5.
# TODO(synk): RoDAlign is a custom CUDA op; reimplemented from the GAIC kernel
# semantics here rather than binding to the original extension. Verify the
# original kernel's boundary inclusivity (samples exactly on rs/re) if box-edge
# bit-parity matters.
# ----------------------------------------------------------------------------
def rod_align_avg(f, boxes, B, M, pooled, spatial_scale):
    _, C, H, W = f.shape
    R = boxes.shape[0]
    ah = aw = pooled + 1
    bin_h = (H - 1.001) / (ah - 1.0)
    bin_w = (W - 1.001) / (aw - 1.0)
    h = jnp.arange(ah, dtype=jnp.float32) * bin_h
    w = jnp.arange(aw, dtype=jnp.float32) * bin_w
    hstart = jnp.minimum(jnp.floor(h), H - 2).astype(jnp.int32)
    wstart = jnp.minimum(jnp.floor(w), W - 2).astype(jnp.int32)
    hr = h - hstart.astype(jnp.float32)
    wr = w - wstart.astype(jnp.float32)
    gy = jnp.arange(H)
    gx = jnp.arange(W)
    # Fixed bilinear interpolation matrices (ah, H) / (aw, W) -> matmuls, no gathers.
    Ay = ((hstart[:, None] == gy).astype(jnp.float32) * (1.0 - hr)[:, None]
          + ((hstart + 1)[:, None] == gy).astype(jnp.float32) * hr[:, None])
    Ax = ((wstart[:, None] == gx).astype(jnp.float32) * (1.0 - wr)[:, None]
          + ((wstart + 1)[:, None] == gx).astype(jnp.float32) * wr[:, None])
    f_b = f.astype(jnp.bfloat16)
    tmp = jnp.einsum("iy,bcyx->bcix", Ay.astype(jnp.bfloat16), f_b,
                     preferred_element_type=jnp.float32)           # (B, C, ah, W)
    img_val = jnp.einsum("bcix,jx->bcij", tmp.astype(jnp.bfloat16),
                         Ax.astype(jnp.bfloat16),
                         preferred_element_type=jnp.float32)        # (B, C, ah, aw)

    rs_w = boxes[:, 0] * spatial_scale
    rs_h = boxes[:, 1] * spatial_scale
    re_w = boxes[:, 2] * spatial_scale
    re_h = boxes[:, 3] * spatial_scale
    keep = ((h[None, :, None] < rs_h[:, None, None]) | (h[None, :, None] > re_h[:, None, None])
            | (w[None, None, :] < rs_w[:, None, None]) | (w[None, None, :] > re_w[:, None, None]))
    keep = keep.reshape(B, M, ah, aw).astype(jnp.float32)
    out = img_val[:, None] * keep[:, :, None]                       # (B, M, C, ah, aw)
    pooled_out = (out[..., :-1, :-1] + out[..., :-1, 1:]
                  + out[..., 1:, :-1] + out[..., 1:, 1:]) * 0.25
    return pooled_out.reshape(R, C, pooled, pooled)                 # (B*M, C, 5, 5) f32


# ----------------------------------------------------------------------------
# CropScore parameters (deterministic synthetic init, PyTorch layouts) and the
# one-time weight preparation (pad / transpose / split / bf16 cast), hoisted
# out of the per-call forward.
# ----------------------------------------------------------------------------
def init_params(key, feat_dim):
    c2 = feat_dim * 2
    ks = jax.random.split(key, 6)
    return dict(
        conv_w=jax.random.normal(ks[0], (128, c2, 5, 5), jnp.float32) * 0.05,  # (out,in,kh,kw)
        conv_b=jax.random.normal(ks[1], (128,), jnp.float32) * 0.05,
        fc1_w=jax.random.normal(ks[2], (128, 128), jnp.float32) * 0.05,        # torch (out,in)
        fc1_b=jax.random.normal(ks[3], (128,), jnp.float32) * 0.05,
        fc2_w=jax.random.normal(ks[4], (1, 128), jnp.float32) * 0.05,          # torch (out,in)
        fc2_b=jax.random.normal(ks[5], (1,), jnp.float32) * 0.05,
    )


def prepare_net_params(params, feat_dim, *, lanes=128):
    """Build the padded/transposed/split bf16 weights once (not per forward)."""
    C = feat_dim
    K1 = C * 25
    K1p = _round_up(K1, lanes)
    # conv5x5 on a 5x5 input == dense; torch input is cat([x1, x2], dim=1), so
    # input-channel-major flattening puts the RoI half in the first C*25 rows.
    w1 = params["conv_w"].reshape(128, 2 * K1)
    w1a = jnp.pad(w1[:, :K1].T, ((0, K1p - K1), (0, 0)))   # RoI half, lane-padded rows are zero
    w1b = jnp.pad(w1[:, K1:].T, ((0, K1p - K1), (0, 0)))   # RoD half
    return dict(
        w1a=w1a.astype(jnp.bfloat16),
        w1b=w1b.astype(jnp.bfloat16),
        b1=params["conv_b"].reshape(1, 128).astype(jnp.float32),
        w2=params["fc1_w"].T.astype(jnp.bfloat16),         # y = x @ W.T
        b2=params["fc1_b"].reshape(1, 128).astype(jnp.float32),
        w3=params["fc2_w"].astype(jnp.bfloat16),            # (1,128) row: used as w3 @ h^T
        b3=params["fc2_b"].reshape(1, 1).astype(jnp.float32),
    )


def crop_score_forward(net, xyxy, f, img_size):
    B, M, _ = xyxy.shape
    _, C, Hf, Wf = f.shape
    xyxy_img = jnp.clip(xyxy, 0.0, 1.0) * img_size
    boxes = xyxy_img.reshape(B * M, 4).astype(jnp.float32)

    x1 = roi_align_tv(f, boxes, B, M, 5, Wf / img_size)     # (B*M, C, 5, 5)
    x2 = rod_align_avg(f, boxes, B, M, 5, 1.0 / 16.0)       # (B*M, C, 5, 5)

    R = B * M
    K1 = C * 25
    K1p = net["w1a"].shape[0]
    tm = _pick_row_tile(R)
    Rp = _round_up(R, tm)

    def prep(x):   # per-half pad + bf16 cast (no (R, 2C*25) concat materialized)
        return jnp.pad(x.reshape(R, K1), ((0, Rp - R), (0, K1p - K1))).astype(jnp.bfloat16)

    scores = crop_mlp_pallas(prep(x1), prep(x2), net, tm=tm)   # (Rp,)
    return scores[:R].reshape(B, M)


if __name__ == "__main__":
    B, M, feat_dim = 2, 8, 8
    img_size = 128
    Hf = Wf = img_size // 16            # feature stride 16 -> matches RoDAlignAvg(.., 1/16)

    key = jax.random.PRNGKey(0)
    kp, kb, kf = jax.random.split(key, 3)
    params = init_params(kp, feat_dim)
    net = prepare_net_params(params, feat_dim)   # hoisted one-time weight prep

    pts = jax.random.uniform(kb, (B, M, 4), jnp.float32)
    x_lo = jnp.minimum(pts[..., 0], pts[..., 2])
    x_hi = jnp.maximum(pts[..., 0], pts[..., 2])
    y_lo = jnp.minimum(pts[..., 1], pts[..., 3])
    y_hi = jnp.maximum(pts[..., 1], pts[..., 3])
    xyxy = jnp.stack([x_lo, y_lo, x_hi, y_hi], axis=-1)          # (B, M, 4) in [0, 1]
    f = jax.random.normal(kf, (B, feat_dim, Hf, Wf), jnp.float32)

    fwd = jax.jit(functools.partial(crop_score_forward, img_size=float(img_size)))
    scores = fwd(net, xyxy, f)
    jax.block_until_ready(scores)
    assert scores.shape == (B, M)
    assert bool(jnp.all(jnp.isfinite(scores)))
    print("KERNEL_OK")
</pallas_src>

<mosaic_0001>
module attributes {stable_mosaic.version = 11 : i64} {
  func.func @_crop_mlp_kernel(%arg0: i32, %arg1: memref<16x256xbf16, #tpu.memory_space<vmem>>, %arg2: memref<16x256xbf16, #tpu.memory_space<vmem>>, %arg3: memref<256x128xbf16, #tpu.memory_space<vmem>>, %arg4: memref<256x128xbf16, #tpu.memory_space<vmem>>, %arg5: memref<1x128xf32, #tpu.memory_space<vmem>>, %arg6: memref<128x128xbf16, #tpu.memory_space<vmem>>, %arg7: memref<1x128xf32, #tpu.memory_space<vmem>>, %arg8: memref<1x128xbf16, #tpu.memory_space<vmem>>, %arg9: memref<1x1xf32, #tpu.memory_space<vmem>>, %arg10: memref<1x1x16xf32, #tpu.memory_space<vmem>>) attributes {dimension_semantics = [#tpu.dimension_semantics<parallel>], iteration_bounds = array<i64: 1>, scalar_prefetch = 0 : i64, scratch_operands = 0 : i64, tpu.core_type = #tpu.core_type<tc>, window_params = [{transform_indices = @transform_0, window_bounds = array<i64: 16, 256>}, {transform_indices = @transform_1, window_bounds = array<i64: 16, 256>}, {pipeline_mode = #tpu.pipeline_mode<synchronous>, transform_indices = @transform_2, window_bounds = array<i64: 256, 128>}, {pipeline_mode = #tpu.pipeline_mode<synchronous>, transform_indices = @transform_3, window_bounds = array<i64: 256, 128>}, {pipeline_mode = #tpu.pipeline_mode<synchronous>, transform_indices = @transform_4, window_bounds = array<i64: 1, 128>}, {pipeline_mode = #tpu.pipeline_mode<synchronous>, transform_indices = @transform_5, window_bounds = array<i64: 128, 128>}, {pipeline_mode = #tpu.pipeline_mode<synchronous>, transform_indices = @transform_6, window_bounds = array<i64: 1, 128>}, {pipeline_mode = #tpu.pipeline_mode<synchronous>, transform_indices = @transform_7, window_bounds = array<i64: 1, 128>}, {pipeline_mode = #tpu.pipeline_mode<synchronous>, transform_indices = @transform_8, window_bounds = array<i64: 1, 1>}, {transform_indices = @transform_9, window_bounds = array<i64: 1, 1, 16>}]} {
    %c0 = arith.constant 0 : index
    %c0_0 = arith.constant 0 : index
    %0 = vector.load %arg1[%c0, %c0_0] : memref<16x256xbf16, #tpu.memory_space<vmem>>, vector<16x256xbf16>
    %c0_1 = arith.constant 0 : index
    %c0_2 = arith.constant 0 : index
    %1 = vector.load %arg3[%c0_1, %c0_2] : memref<256x128xbf16, #tpu.memory_space<vmem>>, vector<256x128xbf16>
    %cst = arith.constant dense<0.000000e+00> : vector<16x128xf32>
    %2 = tpu.matmul %0, %1, %cst {dimension_numbers = #tpu.dot_dimension_numbers<[1], [0], [0], [1], [0, 0, 1, 1], [], []>} : vector<16x256xbf16>, vector<256x128xbf16>, vector<16x128xf32> -> vector<16x128xf32>
    %c0_3 = arith.constant 0 : index
    %c0_4 = arith.constant 0 : index
    %3 = vector.load %arg2[%c0_3, %c0_4] : memref<16x256xbf16, #tpu.memory_space<vmem>>, vector<16x256xbf16>
    %c0_5 = arith.constant 0 : index
    %c0_6 = arith.constant 0 : index
    %4 = vector.load %arg4[%c0_5, %c0_6] : memref<256x128xbf16, #tpu.memory_space<vmem>>, vector<256x128xbf16>
    %cst_7 = arith.constant dense<0.000000e+00> : vector<16x128xf32>
    %5 = tpu.matmul %3, %4, %cst_7 {dimension_numbers = #tpu.dot_dimension_numbers<[1], [0], [0], [1], [0, 0, 1, 1], [], []>} : vector<16x256xbf16>, vector<256x128xbf16>, vector<16x128xf32> -> vector<16x128xf32>
    %6 = arith.addf %2, %5 : vector<16x128xf32>
    %c0_8 = arith.constant 0 : index
    %c0_9 = arith.constant 0 : index
    %7 = vector.load %arg5[%c0_8, %c0_9] : memref<1x128xf32, #tpu.memory_space<vmem>>, vector<1x128xf32>
    %8 = vector.broadcast %7 : vector<1x128xf32> to vector<16x128xf32>
    %9 = arith.addf %6, %8 : vector<16x128xf32>
    %cst_10 = arith.constant 0.000000e+00 : f32
    %10 = vector.broadcast %cst_10 : f32 to vector<16x128xf32>
    %11 = arith.maximumf %9, %10 : vector<16x128xf32>
    %12 = arith.truncf %11 : vector<16x128xf32> to vector<16x128xbf16>
    %c0_11 = arith.constant 0 : index
    %c0_12 = arith.constant 0 : index
    %13 = vector.load %arg6[%c0_11, %c0_12] : memref<128x128xbf16, #tpu.memory_space<vmem>>, vector<128x128xbf16>
    %cst_13 = arith.constant dense<0.000000e+00> : vector<16x128xf32>
    %14 = tpu.matmul %12, %13, %cst_13 {dimension_numbers = #tpu.dot_dimension_numbers<[1], [0], [0], [1], [0, 0, 1, 1], [], []>} : vector<16x128xbf16>, vector<128x128xbf16>, vector<16x128xf32> -> vector<16x128xf32>
    %c0_14 = arith.constant 0 : index
    %c0_15 = arith.constant 0 : index
    %15 = vector.load %arg7[%c0_14, %c0_15] : memref<1x128xf32, #tpu.memory_space<vmem>>, vector<1x128xf32>
    %16 = vector.broadcast %15 : vector<1x128xf32> to vector<16x128xf32>
    %17 = arith.addf %14, %16 : vector<16x128xf32>
    %cst_16 = arith.constant 0.000000e+00 : f32
    %18 = vector.broadcast %cst_16 : f32 to vector<16x128xf32>
    %19 = arith.maximumf %17, %18 : vector<16x128xf32>
    %c0_17 = arith.constant 0 : index
    %c0_18 = arith.constant 0 : index
    %20 = vector.load %arg8[%c0_17, %c0_18] : memref<1x128xbf16, #tpu.memory_space<vmem>>, vector<1x128xbf16>
    %21 = tpu.transpose %19, [1, 0] : vector<16x128xf32> -> vector<128x16xf32>
    %22 = arith.truncf %21 : vector<128x16xf32> to vector<128x16xbf16>
    %cst_19 = arith.constant dense<0.000000e+00> : vector<1x16xf32>
    %23 = tpu.matmul %20, %22, %cst_19 {dimension_numbers = #tpu.dot_dimension_numbers<[1], [0], [0], [1], [0, 0, 1, 1], [], []>} : vector<1x128xbf16>, vector<128x16xbf16>, vector<1x16xf32> -> vector<1x16xf32>
    %c0_20 = arith.constant 0 : index
    %c0_21 = arith.constant 0 : index
    %24 = vector.load %arg9[%c0_20, %c0_21] : memref<1x1xf32, #tpu.memory_space<vmem>>, vector<1x1xf32>
    %25 = vector.broadcast %24 : vector<1x1xf32> to vector<1x16xf32>
    %26 = arith.addf %23, %25 : vector<1x16xf32>
    %27 = vector.shape_cast %26 : vector<1x16xf32> to vector<1x1x16xf32>
    %c0_22 = arith.constant 0 : index
    %c0_23 = arith.constant 0 : index
    %c0_24 = arith.constant 0 : index
    %28 = vector.load %arg10[%c0_22, %c0_23, %c0_24] : memref<1x1x16xf32, #tpu.memory_space<vmem>>, vector<1x1x16xf32>
    tpu.vector_store %arg10[%c0_22, %c0_23, %c0_24], %27 {strides = array<i32>} : memref<1x1x16xf32, #tpu.memory_space<vmem>>, vector<1x1x16xf32>,
    return
  }
  func.func @transform_0(%arg0: i32) -> (i32, i32) {
    %c0_i32 = arith.constant 0 : i32
    %c0_i32_0 = arith.constant 0 : i32
    return %arg0, %c0_i32 : i32, i32
  }
  func.func @transform_1(%arg0: i32) -> (i32, i32) {
    %c0_i32 = arith.constant 0 : i32
    %c0_i32_0 = arith.constant 0 : i32
    return %arg0, %c0_i32 : i32, i32
  }
  func.func @transform_2(%arg0: i32) -> (i32, i32) {
    %c0_i32 = arith.constant 0 : i32
    %c0_i32_0 = arith.constant 0 : i32
    %c0_i32_1 = arith.constant 0 : i32
    return %c0_i32, %c0_i32_0 : i32, i32
  }
  func.func @transform_3(%arg0: i32) -> (i32, i32) {
    %c0_i32 = arith.constant 0 : i32
    %c0_i32_0 = arith.constant 0 : i32
    %c0_i32_1 = arith.constant 0 : i32
    return %c0_i32, %c0_i32_0 : i32, i32
  }
  func.func @transform_4(%arg0: i32) -> (i32, i32) {
    %c0_i32 = arith.constant 0 : i32
    %c0_i32_0 = arith.constant 0 : i32
    %c0_i32_1 = arith.constant 0 : i32
    return %c0_i32, %c0_i32_0 : i32, i32
  }
  func.func @transform_5(%arg0: i32) -> (i32, i32) {
    %c0_i32 = arith.constant 0 : i32
    %c0_i32_0 = arith.constant 0 : i32
    %c0_i32_1 = arith.constant 0 : i32
    return %c0_i32, %c0_i32_0 : i32, i32
  }
  func.func @transform_6(%arg0: i32) -> (i32, i32) {
    %c0_i32 = arith.constant 0 : i32
    %c0_i32_0 = arith.constant 0 : i32
    %c0_i32_1 = arith.constant 0 : i32
    return %c0_i32, %c0_i32_0 : i32, i32
  }
  func.func @transform_7(%arg0: i32) -> (i32, i32) {
    %c0_i32 = arith.constant 0 : i32
    %c0_i32_0 = arith.constant 0 : i32
    %c0_i32_1 = arith.constant 0 : i32
    return %c0_i32, %c0_i32_0 : i32, i32
  }
  func.func @transform_8(%arg0: i32) -> (i32, i32) {
    %c0_i32 = arith.constant 0 : i32
    %c0_i32_0 = arith.constant 0 : i32
    %c0_i32_1 = arith.constant 0 : i32
    return %c0_i32, %c0_i32_0 : i32, i32
  }
  func.func @transform_9(%arg0: i32) -> (i32, i32, i32) {
    %c0_i32 = arith.constant 0 : i32
    %c0_i32_0 = arith.constant 0 : i32
    %c0_i32_1 = arith.constant 0 : i32
    return %arg0, %c0_i32, %c0_i32_0 : i32, i32, i32
  }
}

</mosaic_0001>

<llo_original>
// kernel: crop_score_forward.1
$region0: #{crop_score_forward.1}
  #allocation0 [shape = 'u32[]', space=smem, size = 0x4, offset = 0x4, fixed_abs, tag = 'smem constant byte address 0x4 - core index']
  #allocation1 [shape = 'u32[144,128]{1,0:T(1,128)}', space=vmem, size = 0x12000, scoped, tag = 'internal scratch']
  #allocation2 [shape = 'f32[1,1]{1,0:T(1,128)S(1)}', space=vmem, size = 0x200, scoped, tag = 'scoped memory for crop_score_forward.1']
  %s0 = inlined_call_operand.vmem [shape: bf16[16,256], index: 0, kind: input, shape index: {}]
  %s1 = inlined_call_operand.vmem [shape: bf16[16,256], index: 1, kind: input, shape index: {}]
  %s2 = inlined_call_operand.vmem [shape: bf16[256,128], index: 2, kind: input, shape index: {}]
  %s3 = inlined_call_operand.vmem [shape: bf16[256,128], index: 3, kind: input, shape index: {}]
  %s4 = inlined_call_operand.vmem [shape: f32[1,128], index: 4, kind: input, shape index: {}]
  %s5 = inlined_call_operand.vmem [shape: bf16[128,128], index: 5, kind: input, shape index: {}]
  %s6 = inlined_call_operand.vmem [shape: f32[1,128], index: 6, kind: input, shape index: {}]
  %s7 = inlined_call_operand.vmem [shape: bf16[1,128], index: 7, kind: input, shape index: {}]
  %s8 = inlined_call_operand.<no memory space> [shape: f32[1,1], index: 8, kind: input, shape index: {}]
  %s9 = inlined_call_operand.vmem [shape: f32[1,1,16], index: 9, kind: output, shape index: {}]
  %s10 = sld [smem:[#allocation0]]
  $region46: #{crop_score_forward.1} parent=0
    _
  %s12 = ssub.s32 1, %s10
  %s13 = scalar_select 0, %s12, %s10
  %v14 = vstv %s8
  %15 = vst [vmem:[#allocation2] sm:$0x1] %v14
  // Predicated region
  $region2: #{crop_score_forward.1} parent=0 // pred_check
    _
  $region3: #{crop_score_forward.1} parent=0 // pred_check_branch
    %17 = sbr.rel (0) target = $region5
  $region4: #{crop_score_forward.1} parent=0 // pred_region
    _
  $region5: #{crop_score_forward.1} parent=0 // pred_fallthru
    _
  // Predicated region
  $region6: #{crop_score_forward.1} parent=0 // pred_check
    _
  $region7: #{crop_score_forward.1} parent=0 // pred_check_branch
    %19 = sbr.rel (0) target = $region9
  $region8: #{crop_score_forward.1} parent=0 // pred_region
    _
  $region9: #{crop_score_forward.1} parent=0 // pred_fallthru
    _
  // Predicated region
  $region10: #{crop_score_forward.1} parent=0 // pred_check
    _
  $region11: #{crop_score_forward.1} parent=0 // pred_check_branch
    %21 = sbr.rel (0) target = $region13
  $region12: #{crop_score_forward.1} parent=0 // pred_region
    _
  $region13: #{crop_score_forward.1} parent=0 // pred_fallthru
    _
  // Predicated region
  $region14: #{crop_score_forward.1} parent=0 // pred_check
    _
  $region15: #{crop_score_forward.1} parent=0 // pred_check_branch
    %23 = sbr.rel (0) target = $region17
  $region16: #{crop_score_forward.1} parent=0 // pred_region
    _
  $region17: #{crop_score_forward.1} parent=0 // pred_fallthru
    _
  // Predicated region
  $region18: #{crop_score_forward.1} parent=0 // pred_check
    _
  $region19: #{crop_score_forward.1} parent=0 // pred_check_branch
    %25 = sbr.rel (0) target = $region21
  $region20: #{crop_score_forward.1} parent=0 // pred_region
    _
  $region21: #{crop_score_forward.1} parent=0 // pred_fallthru
    _
  // Predicated region
  $region22: #{crop_score_forward.1} parent=0 // pred_check
    _
  $region23: #{crop_score_forward.1} parent=0 // pred_check_branch
    %27 = sbr.rel (0) target = $region25
  $region24: #{crop_score_forward.1} parent=0 // pred_region
    _
  $region25: #{crop_score_forward.1} parent=0 // pred_fallthru
    _
  // Predicated region
  $region26: #{crop_score_forward.1} parent=0 // pred_check
    _
  $region27: #{crop_score_forward.1} parent=0 // pred_check_branch
    %29 = sbr.rel (0) target = $region29
  $region28: #{crop_score_forward.1} parent=0 // pred_region
    _
  $region29: #{crop_score_forward.1} parent=0 // pred_fallthru
    _
  // Predicated region
  $region30: #{crop_score_forward.1} parent=0 // pred_check
    _
  $region31: #{crop_score_forward.1} parent=0 // pred_check_branch
    %31 = sbr.rel (0) target = $region33
  $region32: #{crop_score_forward.1} parent=0 // pred_region
    _
  $region33: #{crop_score_forward.1} parent=0 // pred_fallthru
    _
  // Predicated region
  $region34: #{crop_score_forward.1} parent=0 // pred_check
    _
  $region35: #{crop_score_forward.1} parent=0 // pred_check_branch
    %33 = sbr.rel (0) target = $region37
  $region36: #{crop_score_forward.1} parent=0 // pred_region
    _
  $region37: #{crop_score_forward.1} parent=0 // pred_fallthru
    _
  %v35 = vld [vmem:[%s0] sm:$0xff]
  %v36 = vld [vmem:[%s0 + $0x8] sm:$0xff]
  %v37 = vld [vmem:[%s2] sm:$0xf]
  %v38 = vld [vmem:[%s2 + $0x4] sm:$0xf]
  %v39 = vld [vmem:[%s2 + $0x8] sm:$0xf]
  %v40 = vld [vmem:[%s2 + $0xc] sm:$0xf]
  %v41 = vld [vmem:[%s2 + $0x10] sm:$0xf]
  %v42 = vld [vmem:[%s2 + $0x14] sm:$0xf]
  %v43 = vld [vmem:[%s2 + $0x18] sm:$0xf]
  %v44 = vld [vmem:[%s2 + $0x1c] sm:$0xf]
  %v45 = vld [vmem:[%s2 + $0x20] sm:$0xf]
  %v46 = vld [vmem:[%s2 + $0x24] sm:$0xf]
  %v47 = vld [vmem:[%s2 + $0x28] sm:$0xf]
  %v48 = vld [vmem:[%s2 + $0x2c] sm:$0xf]
  %v49 = vld [vmem:[%s2 + $0x30] sm:$0xf]
  %v50 = vld [vmem:[%s2 + $0x34] sm:$0xf]
  %v51 = vld [vmem:[%s2 + $0x38] sm:$0xf]
  %v52 = vld [vmem:[%s2 + $0x3c] sm:$0xf]
  %v53 = vld [vmem:[%s2 + $0x40] sm:$0xf]
  %v54 = vld [vmem:[%s2 + $0x44] sm:$0xf]
  %v55 = vld [vmem:[%s2 + $0x48] sm:$0xf]
  %v56 = vld [vmem:[%s2 + $0x4c] sm:$0xf]
  %v57 = vld [vmem:[%s2 + $0x50] sm:$0xf]
  %v58 = vld [vmem:[%s2 + $0x54] sm:$0xf]
  %v59 = vld [vmem:[%s2 + $0x58] sm:$0xf]
  %v60 = vld [vmem:[%s2 + $0x5c] sm:$0xf]
  %v61 = vld [vmem:[%s2 + $0x60] sm:$0xf]
  %v62 = vld [vmem:[%s2 + $0x64] sm:$0xf]
  %v63 = vld [vmem:[%s2 + $0x68] sm:$0xf]
  %v64 = vld [vmem:[%s2 + $0x6c] sm:$0xf]
  %v65 = vld [vmem:[%s2 + $0x70] sm:$0xf]
  %v66 = vld [vmem:[%s2 + $0x74] sm:$0xf]
  %v67 = vld [vmem:[%s2 + $0x78] sm:$0xf]
  %v68 = vld [vmem:[%s2 + $0x7c] sm:$0xf]
  %v69 = vld [vmem:[%s1] sm:$0xff]
  %v70 = vld [vmem:[%s1 + $0x8] sm:$0xff]
  %v71 = vld [vmem:[%s3] sm:$0xf]
  %v72 = vld [vmem:[%s3 + $0x4] sm:$0xf]
  %v73 = vld [vmem:[%s3 + $0x8] sm:$0xf]
  %v74 = vld [vmem:[%s3 + $0xc] sm:$0xf]
  %v75 = vld [vmem:[%s3 + $0x10] sm:$0xf]
  %v76 = vld [vmem:[%s3 + $0x14] sm:$0xf]
  %v77 = vld [vmem:[%s3 + $0x18] sm:$0xf]
  %v78 = vld [vmem:[%s3 + $0x1c] sm:$0xf]
  %v79 = vld [vmem:[%s3 + $0x20] sm:$0xf]
  %v80 = vld [vmem:[%s3 + $0x24] sm:$0xf]
  %v81 = vld [vmem:[%s3 + $0x28] sm:$0xf]
  %v82 = vld [vmem:[%s3 + $0x2c] sm:$0xf]
  %v83 = vld [vmem:[%s3 + $0x30] sm:$0xf]
  %v84 = vld [vmem:[%s3 + $0x34] sm:$0xf]
  %v85 = vld [vmem:[%s3 + $0x38] sm:$0xf]
  %v86 = vld [vmem:[%s3 + $0x3c] sm:$0xf]
  %v87 = vld [vmem:[%s3 + $0x40] sm:$0xf]
  %v88 = vld [vmem:[%s3 + $0x44] sm:$0xf]
  %v89 = vld [vmem:[%s3 + $0x48] sm:$0xf]
  %v90 = vld [vmem:[%s3 + $0x4c] sm:$0xf]
  %v91 = vld [vmem:[%s3 + $0x50] sm:$0xf]
  %v92 = vld [vmem:[%s3 + $0x54] sm:$0xf]
  %v93 = vld [vmem:[%s3 + $0x58] sm:$0xf]
  %v94 = vld [vmem:[%s3 + $0x5c] sm:$0xf]
  %v95 = vld [vmem:[%s3 + $0x60] sm:$0xf]
  %v96 = vld [vmem:[%s3 + $0x64] sm:$0xf]
  %v97 = vld [vmem:[%s3 + $0x68] sm:$0xf]
  %v98 = vld [vmem:[%s3 + $0x6c] sm:$0xf]
  %v99 = vld [vmem:[%s3 + $0x70] sm:$0xf]
  %v100 = vld [vmem:[%s3 + $0x74] sm:$0xf]
  %v101 = vld [vmem:[%s3 + $0x78] sm:$0xf]
  %v102 = vld [vmem:[%s3 + $0x7c] sm:$0xf]
  %v105 = vunpack.c.l.b16 %v69
  %v106 = vunpack.c.h.b16 %v69
  %v107 = vunpack.c.l.b16 %v70
  %v108 = vunpack.c.h.b16 %v70
  %v109 = vpack.c.b16 %v107, %v105
  %v110 = vpack.c.b16 %v108, %v106
  %v145 = vunpack.c.l.b16 %v71
  %v146 = vunpack.c.l.b16 %v72
  %v147 = vunpack.c.l.b16 %v73
  %v148 = vunpack.c.l.b16 %v74
  %v149 = vunpack.c.l.b16 %v75
  %v150 = vunpack.c.l.b16 %v76
  %v151 = vunpack.c.l.b16 %v77
  %v152 = vunpack.c.l.b16 %v78
  %v153 = vunpack.c.l.b16 %v79
  %v154 = vunpack.c.l.b16 %v80
  %v155 = vunpack.c.l.b16 %v81
  %v156 = vunpack.c.l.b16 %v82
  %v157 = vunpack.c.l.b16 %v83
  %v158 = vunpack.c.l.b16 %v84
  %v159 = vunpack.c.l.b16 %v85
  %v160 = vunpack.c.l.b16 %v86
  %v161 = vunpack.c.l.b16 %v87
  %v162 = vunpack.c.l.b16 %v88
  %v163 = vunpack.c.l.b16 %v89
  %v164 = vunpack.c.l.b16 %v90
  %v165 = vunpack.c.l.b16 %v91
  %v166 = vunpack.c.l.b16 %v92
  %v167 = vunpack.c.l.b16 %v93
  %v168 = vunpack.c.l.b16 %v94
  %v169 = vunpack.c.l.b16 %v95
  %v170 = vunpack.c.l.b16 %v96
  %v171 = vunpack.c.l.b16 %v97
  %v172 = vunpack.c.l.b16 %v98
  %v173 = vunpack.c.l.b16 %v99
  %v174 = vunpack.c.l.b16 %v100
  %v175 = vunpack.c.l.b16 %v101
  %v176 = vunpack.c.l.b16 %v102
  %v177 = vpack.c.b16 %v146, %v145
  %v178 = vpack.c.b16 %v148, %v147
  %v179 = vpack.c.b16 %v150, %v149
  %v180 = vpack.c.b16 %v152, %v151
  %v181 = vpack.c.b16 %v154, %v153
  %v182 = vpack.c.b16 %v156, %v155
  %v183 = vpack.c.b16 %v158, %v157
  %v184 = vpack.c.b16 %v160, %v159
  %v185 = vpack.c.b16 %v162, %v161
  %v186 = vpack.c.b16 %v164, %v163
  %v187 = vpack.c.b16 %v166, %v165
  %v188 = vpack.c.b16 %v168, %v167
  %v189 = vpack.c.b16 %v170, %v169
  %v190 = vpack.c.b16 %v172, %v171
  %v191 = vpack.c.b16 %v174, %v173
  %v192 = vpack.c.b16 %v176, %v175
  %209 = vmatprep.subr.bf16.mxu0 0
  %210 = vmatpush1.bf16.msra.mxu0 %v177
  %211 = vmatprep.subr.bf16.mxu0 0
  %212 = vmatpush1.bf16.msra.mxu0 %v178
  %213 = vmatprep.subr.bf16.mxu0 0
  %214 = vmatpush1.bf16.msra.mxu0 %v179
  %215 = vmatprep.subr.bf16.mxu0 0
  %216 = vmatpush1.bf16.msra.mxu0 %v180
  %217 = vmatprep.subr.bf16.mxu0 0
  %218 = vmatpush1.bf16.msra.mxu0 %v181
  %219 = vmatprep.subr.bf16.mxu0 0
  %220 = vmatpush1.bf16.msra.mxu0 %v182
  %221 = vmatprep.subr.bf16.mxu0 0
  %222 = vmatpush1.bf16.msra.mxu0 %v183
  %223 = vmatprep.subr.bf16.mxu0 0
  %224 = vmatpush1.bf16.msra.mxu0 %v184
  %225 = vmatprep.subr.bf16.mxu0 0
  %226 = vmatpush1.bf16.msra.mxu0 %v185
  %227 = vmatprep.subr.bf16.mxu0 0
  %228 = vmatpush1.bf16.msra.mxu0 %v186
  %229 = vmatprep.subr.bf16.mxu0 0
  %230 = vmatpush1.bf16.msra.mxu0 %v187
  %231 = vmatprep.subr.bf16.mxu0 0
  %232 = vmatpush1.bf16.msra.mxu0 %v188
  %233 = vmatprep.subr.bf16.mxu0 0
  %234 = vmatpush1.bf16.msra.mxu0 %v189
  %235 = vmatprep.subr.bf16.mxu0 0
  %236 = vmatpush1.bf16.msra.mxu0 %v190
  %237 = vmatprep.subr.bf16.mxu0 0
  %238 = vmatpush1.bf16.msra.mxu0 %v191
  %239 = vmatprep.subr.bf16.mxu0 0
  %240 = vmatpush1.bf16.msra.mxu0 %v192
  %241 = vmatprep.mubr.bf16.mxu0 %v110
  %242 = vmatmul.mubr.bf16.gmra.mrb[0].mxu0 %v109
  %v243 = vpop.f32.mrb[0].mxu0
  %v244 = vadd.f32 0.0, %v243
  %v245 = vpop.f32.mrb[0].mxu0
  %v246 = vpop.f32.mrb[0].mxu0
  %v247 = vadd.f32 0.0, %v246
  %v248 = vpop.f32.mrb[0].mxu0
  %249 = vdwg.mxu0
  %v252 = vunpack.c.l.b16 %v35
  %v253 = vunpack.c.h.b16 %v35
  %v254 = vunpack.c.l.b16 %v36
  %v255 = vunpack.c.h.b16 %v36
  %v256 = vpack.c.b16 %v254, %v252
  %v257 = vpack.c.b16 %v255, %v253
  %v292 = vunpack.c.l.b16 %v37
  %v293 = vunpack.c.l.b16 %v38
  %v294 = vunpack.c.l.b16 %v39
  %v295 = vunpack.c.l.b16 %v40
  %v296 = vunpack.c.l.b16 %v41
  %v297 = vunpack.c.l.b16 %v42
  %v298 = vunpack.c.l.b16 %v43
  %v299 = vunpack.c.l.b16 %v44
  %v300 = vunpack.c.l.b16 %v45
  %v301 = vunpack.c.l.b16 %v46
  %v302 = vunpack.c.l.b16 %v47
  %v303 = vunpack.c.l.b16 %v48
  %v304 = vunpack.c.l.b16 %v49
  %v305 = vunpack.c.l.b16 %v50
  %v306 = vunpack.c.l.b16 %v51
  %v307 = vunpack.c.l.b16 %v52
  %v308 = vunpack.c.l.b16 %v53
  %v309 = vunpack.c.l.b16 %v54
  %v310 = vunpack.c.l.b16 %v55
  %v311 = vunpack.c.l.b16 %v56
  %v312 = vunpack.c.l.b16 %v57
  %v313 = vunpack.c.l.b16 %v58
  %v314 = vunpack.c.l.b16 %v59
  %v315 = vunpack.c.l.b16 %v60
  %v316 = vunpack.c.l.b16 %v61
  %v317 = vunpack.c.l.b16 %v62
  %v318 = vunpack.c.l.b16 %v63
  %v319 = vunpack.c.l.b16 %v64
  %v320 = vunpack.c.l.b16 %v65
  %v321 = vunpack.c.l.b16 %v66
  %v322 = vunpack.c.l.b16 %v67
  %v323 = vunpack.c.l.b16 %v68
  %v324 = vpack.c.b16 %v293, %v292
  %v325 = vpack.c.b16 %v295, %v294
  %v326 = vpack.c.b16 %v297, %v296
  %v327 = vpack.c.b16 %v299, %v298
  %v328 = vpack.c.b16 %v301, %v300
  %v329 = vpack.c.b16 %v303, %v302
  %v330 = vpack.c.b16 %v305, %v304
  %v331 = vpack.c.b16 %v307, %v306
  %v332 = vpack.c.b16 %v309, %v308
  %v333 = vpack.c.b16 %v311, %v310
  %v334 = vpack.c.b16 %v313, %v312
  %v335 = vpack.c.b16 %v315, %v314
  %v336 = vpack.c.b16 %v317, %v316
  %v337 = vpack.c.b16 %v319, %v318
  %v338 = vpack.c.b16 %v321, %v320
  %v339 = vpack.c.b16 %v323, %v322
  %356 = vmatprep.subr.bf16.mxu0 0
  %357 = vmatpush1.bf16.msra.mxu0 %v324
  %358 = vmatprep.subr.bf16.mxu0 0
  %359 = vmatpush1.bf16.msra.mxu0 %v325
  %360 = vmatprep.subr.bf16.mxu0 0
  %361 = vmatpush1.bf16.msra.mxu0 %v326
  %362 = vmatprep.subr.bf16.mxu0 0
  %363 = vmatpush1.bf16.msra.mxu0 %v327
  %364 = vmatprep.subr.bf16.mxu0 0
  %365 = vmatpush1.bf16.msra.mxu0 %v328
  %366 = vmatprep.subr.bf16.mxu0 0
  %367 = vmatpush1.bf16.msra.mxu0 %v329
  %368 = vmatprep.subr.bf16.mxu0 0
  %369 = vmatpush1.bf16.msra.mxu0 %v330
  %370 = vmatprep.subr.bf16.mxu0 0
  %371 = vmatpush1.bf16.msra.mxu0 %v331
  %372 = vmatprep.subr.bf16.mxu0 0
  %373 = vmatpush1.bf16.msra.mxu0 %v332
  %374 = vmatprep.subr.bf16.mxu0 0
  %375 = vmatpush1.bf16.msra.mxu0 %v333
  %376 = vmatprep.subr.bf16.mxu0 0
  %377 = vmatpush1.bf16.msra.mxu0 %v334
  %378 = vmatprep.subr.bf16.mxu0 0
  %379 = vmatpush1.bf16.msra.mxu0 %v335
  %380 = vmatprep.subr.bf16.mxu0 0
  %381 = vmatpush1.bf16.msra.mxu0 %v336
  %382 = vmatprep.subr.bf16.mxu0 0
  %383 = vmatpush1.bf16.msra.mxu0 %v337
  %384 = vmatprep.subr.bf16.mxu0 0
  %385 = vmatpush1.bf16.msra.mxu0 %v338
  %386 = vmatprep.subr.bf16.mxu0 0
  %387 = vmatpush1.bf16.msra.mxu0 %v339
  %388 = vmatprep.mubr.bf16.mxu0 %v257
  %389 = vmatmul.mubr.bf16.gmra.mrb[0].mxu0 %v256
  %v390 = vpop.f32.mrb[0].mxu0
  %v391 = vadd.f32 %v244, %v390
  %v392 = vpop.f32.mrb[0].mxu0
  %v393 = vpop.f32.mrb[0].mxu0
  %v394 = vadd.f32 %v247, %v393
  %v395 = vpop.f32.mrb[0].mxu0
  %396 = vdwg.mxu0
  %v397 = vld [vmem:[%s4] sm:$0x1]
  %v399 = vlaneseq
  %v400 = vshrl.u32 %v399, 7
  %v401 = vsub.s32 0, %v400
  %v402 = vrot.slane %v397, %v401
  %v404 = vadd.f32 %v391, %v402
  %v405 = vadd.f32 %v394, %v402
  %v406 = vmax.f32 %v404, 0.0
  %v407 = vmax.f32 %v405, 0.0
  %v408 = vpack.c.bf16 %v407, %v406
  %v409 = vld [vmem:[%s5] sm:$0xf]
  %v410 = vld [vmem:[%s5 + $0x4] sm:$0xf]
  %v411 = vld [vmem:[%s5 + $0x8] sm:$0xf]
  %v412 = vld [vmem:[%s5 + $0xc] sm:$0xf]
  %v413 = vld [vmem:[%s5 + $0x10] sm:$0xf]
  %v414 = vld [vmem:[%s5 + $0x14] sm:$0xf]
  %v415 = vld [vmem:[%s5 + $0x18] sm:$0xf]
  %v416 = vld [vmem:[%s5 + $0x1c] sm:$0xf]
  %v417 = vld [vmem:[%s5 + $0x20] sm:$0xf]
  %v418 = vld [vmem:[%s5 + $0x24] sm:$0xf]
  %v419 = vld [vmem:[%s5 + $0x28] sm:$0xf]
  %v420 = vld [vmem:[%s5 + $0x2c] sm:$0xf]
  %v421 = vld [vmem:[%s5 + $0x30] sm:$0xf]
  %v422 = vld [vmem:[%s5 + $0x34] sm:$0xf]
  %v423 = vld [vmem:[%s5 + $0x38] sm:$0xf]
  %v424 = vld [vmem:[%s5 + $0x3c] sm:$0xf]
  %v425 = vld [vmem:[%s6] sm:$0x1]
  %v427 = vlaneseq
  %v428 = vshrl.u32 %v427, 7
  %v429 = vsub.s32 0, %v428
  %v430 = vrot.slane %v425, %v429
  %v448 = vunpack.c.l.b16 %v409
  %v449 = vunpack.c.l.b16 %v410
  %v450 = vunpack.c.l.b16 %v411
  %v451 = vunpack.c.l.b16 %v412
  %v452 = vunpack.c.l.b16 %v413
  %v453 = vunpack.c.l.b16 %v414
  %v454 = vunpack.c.l.b16 %v415
  %v455 = vunpack.c.l.b16 %v416
  %v456 = vunpack.c.l.b16 %v417
  %v457 = vunpack.c.l.b16 %v418
  %v458 = vunpack.c.l.b16 %v419
  %v459 = vunpack.c.l.b16 %v420
  %v460 = vunpack.c.l.b16 %v421
  %v461 = vunpack.c.l.b16 %v422
  %v462 = vunpack.c.l.b16 %v423
  %v463 = vunpack.c.l.b16 %v424
  %v464 = vpack.c.b16 %v449, %v448
  %v465 = vpack.c.b16 %v451, %v450
  %v466 = vpack.c.b16 %v453, %v452
  %v467 = vpack.c.b16 %v455, %v454
  %v468 = vpack.c.b16 %v457, %v456
  %v469 = vpack.c.b16 %v459, %v458
  %v470 = vpack.c.b16 %v461, %v460
  %v471 = vpack.c.b16 %v463, %v462
  %480 = vmatprep.subr.bf16.mxu0 0
  %481 = vmatpush1.bf16.msra.mxu0 %v464
  %482 = vmatprep.subr.bf16.mxu0 0
  %483 = vmatpush1.bf16.msra.mxu0 %v465
  %484 = vmatprep.subr.bf16.mxu0 0
  %485 = vmatpush1.bf16.msra.mxu0 %v466
  %486 = vmatprep.subr.bf16.mxu0 0
  %487 = vmatpush1.bf16.msra.mxu0 %v467
  %488 = vmatprep.subr.bf16.mxu0 0
  %489 = vmatpush1.bf16.msra.mxu0 %v468
  %490 = vmatprep.subr.bf16.mxu0 0
  %491 = vmatpush1.bf16.msra.mxu0 %v469
  %492 = vmatprep.subr.bf16.mxu0 0
  %493 = vmatpush1.bf16.msra.mxu0 %v470
  %494 = vmatprep.subr.bf16.mxu0 0
  %495 = vmatpush1.bf16.msra.mxu0 %v471
  %496 = vmatprep.subr.bf16.mxu0 0
  %497 = vmatpush1.bf16.msra.mxu0 0
  %498 = vmatprep.subr.bf16.mxu0 0
  %499 = vmatpush1.bf16.msra.mxu0 0
  %500 = vmatprep.subr.bf16.mxu0 0
  %501 = vmatpush1.bf16.msra.mxu0 0
  %502 = vmatprep.subr.bf16.mxu0 0
  %503 = vmatpush1.bf16.msra.mxu0 0
  %504 = vmatprep.subr.bf16.mxu0 0
  %505 = vmatpush1.bf16.msra.mxu0 0
  %506 = vmatprep.subr.bf16.mxu0 0
  %507 = vmatpush1.bf16.msra.mxu0 0
  %508 = vmatprep.subr.bf16.mxu0 0
  %509 = vmatpush1.bf16.msra.mxu0 0
  %510 = vmatprep.subr.bf16.mxu0 0
  %511 = vmatpush1.bf16.msra.mxu0 0
  %512 = vmatprep.mubr.bf16.mxu0 0
  %513 = vmatmul.mubr.bf16.gmra.mrb[0].mxu0 %v408
  %v514 = vpop.f32.mrb[0].mxu0
  %v515 = vadd.f32 %v430, %v514
  %v516 = vpop.f32.mrb[0].mxu0
  %v517 = vpop.f32.mrb[0].mxu0
  %v518 = vadd.f32 %v430, %v517
  %v519 = vpop.f32.mrb[0].mxu0
  %520 = vdwg.mxu0
  %v521 = vmax.f32 %v515, 0.0
  %v522 = vmax.f32 %v518, 0.0
  %v523 = vld [vmem:[%s7] sm:$0x1]
  %524 = vxpose.xlu0.b32.start [1/16] %v521, 128
  %525 = vxpose.xlu0.b32.cont [2/16] %v522, 128
  %526 = vxpose.xlu0.b32.cont [3/16] 0.0, 128
  %527 = vxpose.xlu0.b32.cont [4/16] 0.0, 128
  %528 = vxpose.xlu0.b32.cont [5/16] 0.0, 128
  %529 = vxpose.xlu0.b32.cont [6/16] 0.0, 128
  %530 = vxpose.xlu0.b32.cont [7/16] 0.0, 128
  %531 = vxpose.xlu0.b32.cont [8/16] 0.0, 128
  %532 = vxpose.xlu0.b32.cont [9/16] 0.0, 128
  %533 = vxpose.xlu0.b32.cont [10/16] 0.0, 128
  %534 = vxpose.xlu0.b32.cont [11/16] 0.0, 128
  %535 = vxpose.xlu0.b32.cont [12/16] 0.0, 128
  %536 = vxpose.xlu0.b32.cont [13/16] 0.0, 128
  %537 = vxpose.xlu0.b32.cont [14/16] 0.0, 128
  %538 = vxpose.xlu0.b32.cont [15/16] 0.0, 128
  %539 = vxpose.xlu0.b32.end [16/16] 0.0, 128
  %v540 = vpop.trf.xlu0
  %v541 = vpop.trf.xlu0
  %v542 = vpop.trf.xlu0
  %v543 = vpop.trf.xlu0
  %v544 = vpop.trf.xlu0
  %v545 = vpop.trf.xlu0
  %v546 = vpop.trf.xlu0
  %v547 = vpop.trf.xlu0
  %v548 = vpop.trf.xlu0
  %v549 = vpop.trf.xlu0
  %v550 = vpop.trf.xlu0
  %v551 = vpop.trf.xlu0
  %v552 = vpop.trf.xlu0
  %v553 = vpop.trf.xlu0
  %v554 = vpop.trf.xlu0
  %v555 = vpop.trf.xlu0
  %v556 = vpack.c.bf16 %v541, %v540
  %v557 = vpack.c.bf16 %v543, %v542
  %v558 = vpack.c.bf16 %v545, %v544
  %v559 = vpack.c.bf16 %v547, %v546
  %v560 = vpack.c.bf16 %v549, %v548
  %v561 = vpack.c.bf16 %v551, %v550
  %v562 = vpack.c.bf16 %v553, %v552
  %v563 = vpack.c.bf16 %v555, %v554
  %v564 = vld [vmem:[#allocation2] sm:$0x1]
  %566 = vset.pattern.permute.xlu0 0
  %567 = vperm.xlu0 %566, %v564
  %v568 = vpop.permute.xlu0 %567
  %v570 = vlaneseq
  %v571 = vshrl.u32 %v570, 7
  %v572 = vsub.s32 0, %v571
  %v573 = vrot.slane %v568, %v572
  %574 = vmatprep.subr.bf16.mxu0 0
  %575 = vmatpush1.bf16.msra.mxu0 %v556
  %576 = vmatprep.subr.bf16.mxu0 0
  %577 = vmatpush1.bf16.msra.mxu0 %v557
  %578 = vmatprep.subr.bf16.mxu0 0
  %579 = vmatpush1.bf16.msra.mxu0 %v558
  %580 = vmatprep.subr.bf16.mxu0 0
  %581 = vmatpush1.bf16.msra.mxu0 %v559
  %582 = vmatprep.subr.bf16.mxu0 0
  %583 = vmatpush1.bf16.msra.mxu0 %v560
  %584 = vmatprep.subr.bf16.mxu0 0
  %585 = vmatpush1.bf16.msra.mxu0 %v561
  %586 = vmatprep.subr.bf16.mxu0 0
  %587 = vmatpush1.bf16.msra.mxu0 %v562
  %588 = vmatprep.subr.bf16.mxu0 0
  %589 = vmatpush1.bf16.msra.mxu0 %v563
  %590 = vmatprep.subr.bf16.mxu0 0
  %591 = vmatpush1.bf16.msra.mxu0 0
  %592 = vmatprep.subr.bf16.mxu0 0
  %593 = vmatpush1.bf16.msra.mxu0 0
  %594 = vmatprep.subr.bf16.mxu0 0
  %595 = vmatpush1.bf16.msra.mxu0 0
  %596 = vmatprep.subr.bf16.mxu0 0
  %597 = vmatpush1.bf16.msra.mxu0 0
  %598 = vmatprep.subr.bf16.mxu0 0
  %599 = vmatpush1.bf16.msra.mxu0 0
  %600 = vmatprep.subr.bf16.mxu0 0
  %601 = vmatpush1.bf16.msra.mxu0 0
  %602 = vmatprep.subr.bf16.mxu0 0
  %603 = vmatpush1.bf16.msra.mxu0 0
  %604 = vmatprep.subr.bf16.mxu0 0
  %605 = vmatpush1.bf16.msra.mxu0 0
  %606 = vmatprep.mubr.bf16.mxu0 0
  %607 = vmatmul.mubr.bf16.gmra.mrb[0].mxu0 %v523
  %v608 = vpop.f32.mrb[0].mxu0
  %v609 = vadd.f32 %v573, %v608
  %v610 = vpop.f32.mrb[0].mxu0
  %v611 = vpop.f32.mrb[0].mxu0
  %v612 = vpop.f32.mrb[0].mxu0
  %613 = vdwg.mxu0
  %vm614 = vcmask 122880
  %615 = vst.msk [vmem:[%s9] sm:$0x1] %vm614, %v609
  // Predicated region
  $region38: #{crop_score_forward.1} parent=0 // pred_check
    _
  $region39: #{crop_score_forward.1} parent=0 // pred_check_branch
    %617 = sbr.rel (0) target = $region41
  $region40: #{crop_score_forward.1} parent=0 // pred_region
    _
  $region41: #{crop_score_forward.1} parent=0 // pred_fallthru
    _
  // Predicated region
  $region42: #{crop_score_forward.1} parent=0 // pred_check
    _
  $region43: #{crop_score_forward.1} parent=0 // pred_check_branch
    %619 = sbr.rel (0) target = $region45
  $region44: #{crop_score_forward.1} parent=0 // pred_region
    _
  $region45: #{crop_score_forward.1} parent=0 // pred_fallthru
    _

</llo_original>
